<compile_context>
chip_gen: v6e
topology: v6e:2x2x1
jax: 0.10.0
libtpu: 0.0.40
codegen_flags: <defaults>
</compile_context>

<pallas_src>
import functools

import jax
import jax.numpy as jnp
from jax import lax
from jax.experimental import pallas as pl
from jax.experimental.pallas import tpu as pltpu


# ----------------------------- Pallas kernel ------------------------------ #
def _prediction_mlp_kernel(x_ref, w1_ref, b1_ref, g_ref, beta_ref,
                           w2_ref, b2_ref, out_ref,
                           h_ref, sum_ref, sumsq_ref, *, inv_b, eps):
    """Fused Linear -> BatchNorm1d(batch stats) -> ReLU -> Linear.

    Grid = (phase, row_tile):
      phase 0: h = x @ W1 + b1; stash h in VMEM; accumulate sum / sum(h^2)
      phase 1: normalize stashed h with batch stats, affine + ReLU, h @ W2 + b2
    """
    p = pl.program_id(0)   # 0 = stats pass, 1 = emit pass
    i = pl.program_id(1)   # row tile within the batch
    block_rows = x_ref.shape[0]
    row0 = pl.multiple_of(i * block_rows, block_rows)

    @pl.when(p == 0)
    def _stats():
        @pl.when(i == 0)
        def _init():
            sum_ref[...] = jnp.zeros_like(sum_ref)
            sumsq_ref[...] = jnp.zeros_like(sumsq_ref)

        # layer1 Linear: bf16 operands on the MXU, f32 accumulation.
        h = jnp.dot(x_ref[...], w1_ref[...],
                    preferred_element_type=jnp.float32) + b1_ref[...]
        h_ref[pl.ds(row0, block_rows), :] = h          # stash pre-activations
        sum_ref[...] += jnp.sum(h, axis=0, keepdims=True)
        sumsq_ref[...] += jnp.sum(h * h, axis=0, keepdims=True)

    @pl.when(p == 1)
    def _emit():
        mean = sum_ref[...] * inv_b                     # multiply, no divide
        var = sumsq_ref[...] * inv_b - mean * mean      # biased var (PyTorch BN)
        inv_std = lax.rsqrt(var + eps)                  # EUP
        scale = g_ref[...] * inv_std
        shift = beta_ref[...] - mean * scale
        h = h_ref[pl.ds(row0, block_rows), :]           # reuse stashed h
        a = jnp.maximum(h * scale + shift, 0.0)         # BN affine + ReLU (f32)
        out = jnp.dot(a.astype(w2_ref.dtype), w2_ref[...],
                      preferred_element_type=jnp.float32) + b2_ref[...]
        out_ref[...] = out.astype(out_ref.dtype)


# ------------------------------- Wrapper ----------------------------------- #
def prediction_mlp_forward(x, params, *, block_rows=16, eps=1e-5):
    """x: (B, in_dim) f32.  Returns (B, out_dim) f32 predictions."""
    w1, b1 = params["w1"], params["b1"]
    gamma, beta = params["gamma"], params["beta"]
    w2, b2 = params["w2"], params["b2"]

    B, d_in = x.shape
    d_h = w1.shape[1]
    d_out = w2.shape[1]
    assert B % block_rows == 0, "batch must be a multiple of block_rows"
    n_tiles = B // block_rows

    # bf16 MXU operands (weights are parameters; cast once), f32 everywhere else.
    x_bf = x.astype(jnp.bfloat16)
    w1_bf = w1.astype(jnp.bfloat16)
    w2_bf = w2.astype(jnp.bfloat16)

    kernel = functools.partial(_prediction_mlp_kernel,
                               inv_b=1.0 / B, eps=eps)

    # Index maps (scalar int arithmetic only, so they lower cleanly):
    #   x  : walks row tiles in phase 0, stays pinned on the last tile in
    #        phase 1 (x is not needed then -> no extra HBM reads).
    #   out: pinned to tile 0 during phase 0 (nothing is written, so no
    #        garbage writeback), walks row tiles in phase 1.
    x_map = lambda p, i: (i * (1 - p) + (n_tiles - 1) * p, 0)
    out_map = lambda p, i: (i * p, 0)
    const_map2 = lambda p, i: (0, 0)

    grid_spec = pltpu.PrefetchScalarGridSpec(
        num_scalar_prefetch=0,
        grid=(2, n_tiles),
        in_specs=[
            pl.BlockSpec((block_rows, d_in), x_map),     # x row tile
            pl.BlockSpec((d_in, d_h), const_map2),       # W1 (resident)
            pl.BlockSpec((1, d_h), const_map2),          # b1
            pl.BlockSpec((1, d_h), const_map2),          # gamma
            pl.BlockSpec((1, d_h), const_map2),          # beta
            pl.BlockSpec((d_h, d_out), const_map2),      # W2 (resident)
            pl.BlockSpec((1, d_out), const_map2),        # b2
        ],
        out_specs=pl.BlockSpec((block_rows, d_out), out_map),
        scratch_shapes=[
            pltpu.VMEM((B, d_h), jnp.float32),   # stashed hidden pre-activations
            pltpu.VMEM((1, d_h), jnp.float32),   # sum(h)   accumulator
            pltpu.VMEM((1, d_h), jnp.float32),   # sum(h^2) accumulator
        ],
    )

    return pl.pallas_call(
        kernel,
        out_shape=jax.ShapeDtypeStruct((B, d_out), jnp.float32),
        grid_spec=grid_spec,
        compiler_params=pltpu.CompilerParams(
            # batch-stat BN couples all rows -> phases must run sequentially
            dimension_semantics=("arbitrary", "arbitrary"),
            vmem_limit_bytes=32 * 1024 * 1024,
        ),
    )(x_bf, w1_bf, b1.reshape(1, d_h), gamma.reshape(1, d_h),
      beta.reshape(1, d_h), w2_bf, b2.reshape(1, d_out))


def init_params(key, in_dim=128, hidden_dim=128, out_dim=128):
    k1, k2, k3, k4, k5, k6 = jax.random.split(key, 6)
    # Weights stored as (in, out), i.e. transposed vs. PyTorch's (out, in).
    w1 = jax.random.normal(k1, (in_dim, hidden_dim), jnp.float32) * 0.1
    b1 = jax.random.normal(k2, (hidden_dim,), jnp.float32) * 0.1
    gamma = 1.0 + 0.1 * jax.random.normal(k3, (hidden_dim,), jnp.float32)
    beta = 0.1 * jax.random.normal(k4, (hidden_dim,), jnp.float32)
    w2 = jax.random.normal(k5, (hidden_dim, out_dim), jnp.float32) * 0.1
    b2 = jax.random.normal(k6, (out_dim,), jnp.float32) * 0.1
    return {"w1": w1, "b1": b1, "gamma": gamma, "beta": beta,
            "w2": w2, "b2": b2}


def _reference_forward(x, params, eps=1e-5):
    """Pure-JAX reference: Linear -> training-mode BatchNorm1d -> ReLU -> Linear.

    Uses the same bf16 matmul operands / f32 accumulation as the kernel.
    """
    w1, b1 = params["w1"], params["b1"]
    gamma, beta = params["gamma"], params["beta"]
    w2, b2 = params["w2"], params["b2"]
    h = jnp.dot(x.astype(jnp.bfloat16), w1.astype(jnp.bfloat16),
                preferred_element_type=jnp.float32) + b1
    mean = jnp.mean(h, axis=0, keepdims=True)
    var = jnp.mean(h * h, axis=0, keepdims=True) - mean * mean
    a = jnp.maximum((h - mean) * lax.rsqrt(var + eps) * gamma + beta, 0.0)
    return jnp.dot(a.astype(jnp.bfloat16), w2.astype(jnp.bfloat16),
                   preferred_element_type=jnp.float32) + b2


if __name__ == "__main__":
    key = jax.random.PRNGKey(0)
    kx, kp = jax.random.split(key)

    B, IN_DIM, HIDDEN_DIM, OUT_DIM = 32, 128, 128, 128
    x = jax.random.normal(kx, (B, IN_DIM), jnp.float32)
    params = init_params(kp, IN_DIM, HIDDEN_DIM, OUT_DIM)

    out = jax.block_until_ready(prediction_mlp_forward(x, params))
    ref = jax.block_until_ready(_reference_forward(x, params))

    assert out.shape == (B, OUT_DIM)
    assert jnp.allclose(out, ref, rtol=1e-2, atol=1e-2), "mismatch vs reference"

    print("KERNEL_OK")
</pallas_src>

<mosaic_0001>
module attributes {stable_mosaic.version = 11 : i64} {
  func.func @_prediction_mlp_kernel(%arg0: i32, %arg1: i32, %arg2: memref<16x128xbf16, #tpu.memory_space<vmem>>, %arg3: memref<128x128xbf16, #tpu.memory_space<vmem>>, %arg4: memref<1x128xf32, #tpu.memory_space<vmem>>, %arg5: memref<1x128xf32, #tpu.memory_space<vmem>>, %arg6: memref<1x128xf32, #tpu.memory_space<vmem>>, %arg7: memref<128x128xbf16, #tpu.memory_space<vmem>>, %arg8: memref<1x128xf32, #tpu.memory_space<vmem>>, %arg9: memref<16x128xf32, #tpu.memory_space<vmem>>, %arg10: memref<32x128xf32, #tpu.memory_space<vmem>>, %arg11: memref<1x128xf32, #tpu.memory_space<vmem>>, %arg12: memref<1x128xf32, #tpu.memory_space<vmem>>) attributes {dimension_semantics = [#tpu.dimension_semantics<arbitrary>, #tpu.dimension_semantics<arbitrary>], iteration_bounds = array<i64: 2, 2>, scalar_prefetch = 0 : i64, scratch_operands = 3 : i64, tpu.core_type = #tpu.core_type<tc>, window_params = [{transform_indices = @transform_0, window_bounds = array<i64: 16, 128>}, {pipeline_mode = #tpu.pipeline_mode<synchronous>, transform_indices = @transform_1, window_bounds = array<i64: 128, 128>}, {pipeline_mode = #tpu.pipeline_mode<synchronous>, transform_indices = @transform_2, window_bounds = array<i64: 1, 128>}, {pipeline_mode = #tpu.pipeline_mode<synchronous>, transform_indices = @transform_3, window_bounds = array<i64: 1, 128>}, {pipeline_mode = #tpu.pipeline_mode<synchronous>, transform_indices = @transform_4, window_bounds = array<i64: 1, 128>}, {pipeline_mode = #tpu.pipeline_mode<synchronous>, transform_indices = @transform_5, window_bounds = array<i64: 128, 128>}, {pipeline_mode = #tpu.pipeline_mode<synchronous>, transform_indices = @transform_6, window_bounds = array<i64: 1, 128>}, {transform_indices = @transform_7, window_bounds = array<i64: 16, 128>}]} {
    %c16_i32 = arith.constant 16 : i32
    %0 = arith.muli %arg1, %c16_i32 : i32
    %1 = tpu.assume_multiple %0, 16 : i32
    %c0_i32 = arith.constant 0 : i32
    %2 = arith.cmpi eq, %arg0, %c0_i32 : i32
    %3 = arith.extui %2 : i1 to i32
    %c0_i32_0 = arith.constant 0 : i32
    %4 = arith.cmpi ne, %3, %c0_i32_0 : i32
    scf.if %4 {
      %c0_i32_2 = arith.constant 0 : i32
      %8 = arith.cmpi eq, %arg1, %c0_i32_2 : i32
      %9 = arith.extui %8 : i1 to i32
      %c0_i32_3 = arith.constant 0 : i32
      %10 = arith.cmpi ne, %9, %c0_i32_3 : i32
      scf.if %10 {
        %cst_20 = arith.constant 0.000000e+00 : f32
        %30 = vector.broadcast %cst_20 : f32 to vector<1x128xf32>
        %c0_21 = arith.constant 0 : index
        %c0_22 = arith.constant 0 : index
        %31 = vector.load %arg11[%c0_21, %c0_22] : memref<1x128xf32, #tpu.memory_space<vmem>>, vector<1x128xf32>
        tpu.vector_store %arg11[%c0_21, %c0_22], %30 {strides = array<i32>} : memref<1x128xf32, #tpu.memory_space<vmem>>, vector<1x128xf32>,
        %cst_23 = arith.constant 0.000000e+00 : f32
        %32 = vector.broadcast %cst_23 : f32 to vector<1x128xf32>
        %c0_24 = arith.constant 0 : index
        %c0_25 = arith.constant 0 : index
        %33 = vector.load %arg12[%c0_24, %c0_25] : memref<1x128xf32, #tpu.memory_space<vmem>>, vector<1x128xf32>
        tpu.vector_store %arg12[%c0_24, %c0_25], %32 {strides = array<i32>} : memref<1x128xf32, #tpu.memory_space<vmem>>, vector<1x128xf32>,
      } else {
      }
      %c0 = arith.constant 0 : index
      %c0_4 = arith.constant 0 : index
      %11 = vector.load %arg2[%c0, %c0_4] : memref<16x128xbf16, #tpu.memory_space<vmem>>, vector<16x128xbf16>
      %c0_5 = arith.constant 0 : index
      %c0_6 = arith.constant 0 : index
      %12 = vector.load %arg3[%c0_5, %c0_6] : memref<128x128xbf16, #tpu.memory_space<vmem>>, vector<128x128xbf16>
      %cst = arith.constant dense<0.000000e+00> : vector<16x128xf32>
      %13 = tpu.matmul %11, %12, %cst {dimension_numbers = #tpu.dot_dimension_numbers<[1], [0], [0], [1], [0, 0, 1, 1], [], []>} : vector<16x128xbf16>, vector<128x128xbf16>, vector<16x128xf32> -> vector<16x128xf32>
      %c0_7 = arith.constant 0 : index
      %c0_8 = arith.constant 0 : index
      %14 = vector.load %arg4[%c0_7, %c0_8] : memref<1x128xf32, #tpu.memory_space<vmem>>, vector<1x128xf32>
      %15 = vector.broadcast %14 : vector<1x128xf32> to vector<16x128xf32>
      %16 = arith.addf %13, %15 : vector<16x128xf32>
      %17 = arith.index_cast %1 : i32 to index
      %c0_9 = arith.constant 0 : index
      %18 = vector.load %arg10[%17, %c0_9] : memref<32x128xf32, #tpu.memory_space<vmem>>, vector<16x128xf32>
      tpu.vector_store %arg10[%17, %c0_9], %16 {strides = array<i32>} : memref<32x128xf32, #tpu.memory_space<vmem>>, vector<16x128xf32>,
      %c0_10 = arith.constant 0 : index
      %c0_11 = arith.constant 0 : index
      %19 = vector.load %arg11[%c0_10, %c0_11] : memref<1x128xf32, #tpu.memory_space<vmem>>, vector<1x128xf32>
      %cst_12 = arith.constant dense<0.000000e+00> : vector<128xf32>
      %20 = vector.multi_reduction <add>, %16, %cst_12 [0] : vector<16x128xf32> to vector<128xf32>
      %21 = vector.shape_cast %20 : vector<128xf32> to vector<1x128xf32>
      %22 = arith.addf %19, %21 : vector<1x128xf32>
      %c0_13 = arith.constant 0 : index
      %c0_14 = arith.constant 0 : index
      %23 = vector.load %arg11[%c0_13, %c0_14] : memref<1x128xf32, #tpu.memory_space<vmem>>, vector<1x128xf32>
      tpu.vector_store %arg11[%c0_13, %c0_14], %22 {strides = array<i32>} : memref<1x128xf32, #tpu.memory_space<vmem>>, vector<1x128xf32>,
      %c0_15 = arith.constant 0 : index
      %c0_16 = arith.constant 0 : index
      %24 = vector.load %arg12[%c0_15, %c0_16] : memref<1x128xf32, #tpu.memory_space<vmem>>, vector<1x128xf32>
      %25 = arith.mulf %16, %16 : vector<16x128xf32>
      %cst_17 = arith.constant dense<0.000000e+00> : vector<128xf32>
      %26 = vector.multi_reduction <add>, %25, %cst_17 [0] : vector<16x128xf32> to vector<128xf32>
      %27 = vector.shape_cast %26 : vector<128xf32> to vector<1x128xf32>
      %28 = arith.addf %24, %27 : vector<1x128xf32>
      %c0_18 = arith.constant 0 : index
      %c0_19 = arith.constant 0 : index
      %29 = vector.load %arg12[%c0_18, %c0_19] : memref<1x128xf32, #tpu.memory_space<vmem>>, vector<1x128xf32>
      tpu.vector_store %arg12[%c0_18, %c0_19], %28 {strides = array<i32>} : memref<1x128xf32, #tpu.memory_space<vmem>>, vector<1x128xf32>,
    } else {
    }
    %c1_i32 = arith.constant 1 : i32
    %5 = arith.cmpi eq, %arg0, %c1_i32 : i32
    %6 = arith.extui %5 : i1 to i32
    %c0_i32_1 = arith.constant 0 : i32
    %7 = arith.cmpi ne, %6, %c0_i32_1 : i32
    scf.if %7 {
      %c0 = arith.constant 0 : index
      %c0_2 = arith.constant 0 : index
      %8 = vector.load %arg11[%c0, %c0_2] : memref<1x128xf32, #tpu.memory_space<vmem>>, vector<1x128xf32>
      %cst = arith.constant 3.125000e-02 : f32
      %9 = vector.broadcast %cst : f32 to vector<1x128xf32>
      %10 = arith.mulf %8, %9 : vector<1x128xf32>
      %c0_3 = arith.constant 0 : index
      %c0_4 = arith.constant 0 : index
      %11 = vector.load %arg12[%c0_3, %c0_4] : memref<1x128xf32, #tpu.memory_space<vmem>>, vector<1x128xf32>
      %cst_5 = arith.constant 3.125000e-02 : f32
      %12 = vector.broadcast %cst_5 : f32 to vector<1x128xf32>
      %13 = arith.mulf %11, %12 : vector<1x128xf32>
      %14 = arith.mulf %10, %10 : vector<1x128xf32>
      %15 = arith.subf %13, %14 : vector<1x128xf32>
      %cst_6 = arith.constant 9.99999974E-6 : f32
      %16 = vector.broadcast %cst_6 : f32 to vector<1x128xf32>
      %17 = arith.addf %15, %16 : vector<1x128xf32>
      %18 = math.rsqrt %17 : vector<1x128xf32>
      %c0_7 = arith.constant 0 : index
      %c0_8 = arith.constant 0 : index
      %19 = vector.load %arg5[%c0_7, %c0_8] : memref<1x128xf32, #tpu.memory_space<vmem>>, vector<1x128xf32>
      %20 = arith.mulf %19, %18 : vector<1x128xf32>
      %c0_9 = arith.constant 0 : index
      %c0_10 = arith.constant 0 : index
      %21 = vector.load %arg6[%c0_9, %c0_10] : memref<1x128xf32, #tpu.memory_space<vmem>>, vector<1x128xf32>
      %22 = arith.mulf %10, %20 : vector<1x128xf32>
      %23 = arith.subf %21, %22 : vector<1x128xf32>
      %24 = arith.index_cast %1 : i32 to index
      %c0_11 = arith.constant 0 : index
      %25 = vector.load %arg10[%24, %c0_11] : memref<32x128xf32, #tpu.memory_space<vmem>>, vector<16x128xf32>
      %26 = vector.broadcast %20 : vector<1x128xf32> to vector<16x128xf32>
      %27 = arith.mulf %25, %26 : vector<16x128xf32>
      %28 = vector.broadcast %23 : vector<1x128xf32> to vector<16x128xf32>
      %29 = arith.addf %27, %28 : vector<16x128xf32>
      %cst_12 = arith.constant 0.000000e+00 : f32
      %30 = vector.broadcast %cst_12 : f32 to vector<16x128xf32>
      %31 = arith.maximumf %29, %30 : vector<16x128xf32>
      %32 = arith.truncf %31 : vector<16x128xf32> to vector<16x128xbf16>
      %c0_13 = arith.constant 0 : index
      %c0_14 = arith.constant 0 : index
      %33 = vector.load %arg7[%c0_13, %c0_14] : memref<128x128xbf16, #tpu.memory_space<vmem>>, vector<128x128xbf16>
      %cst_15 = arith.constant dense<0.000000e+00> : vector<16x128xf32>
      %34 = tpu.matmul %32, %33, %cst_15 {dimension_numbers = #tpu.dot_dimension_numbers<[1], [0], [0], [1], [0, 0, 1, 1], [], []>} : vector<16x128xbf16>, vector<128x128xbf16>, vector<16x128xf32> -> vector<16x128xf32>
      %c0_16 = arith.constant 0 : index
      %c0_17 = arith.constant 0 : index
      %35 = vector.load %arg8[%c0_16, %c0_17] : memref<1x128xf32, #tpu.memory_space<vmem>>, vector<1x128xf32>
      %36 = vector.broadcast %35 : vector<1x128xf32> to vector<16x128xf32>
      %37 = arith.addf %34, %36 : vector<16x128xf32>
      %c0_18 = arith.constant 0 : index
      %c0_19 = arith.constant 0 : index
      %38 = vector.load %arg9[%c0_18, %c0_19] : memref<16x128xf32, #tpu.memory_space<vmem>>, vector<16x128xf32>
      tpu.vector_store %arg9[%c0_18, %c0_19], %37 {strides = array<i32>} : memref<16x128xf32, #tpu.memory_space<vmem>>, vector<16x128xf32>,
    } else {
    }
    return
  }
  func.func @transform_0(%arg0: i32, %arg1: i32) -> (i32, i32) {
    %c1_i32 = arith.constant 1 : i32
    %0 = arith.subi %c1_i32, %arg0 : i32
    %1 = arith.muli %arg1, %0 : i32
    %c1_i32_0 = arith.constant 1 : i32
    %2 = arith.muli %c1_i32_0, %arg0 : i32
    %3 = arith.addi %1, %2 : i32
    %c0_i32 = arith.constant 0 : i32
    %c0_i32_1 = arith.constant 0 : i32
    return %3, %c0_i32 : i32, i32
  }
  func.func @transform_1(%arg0: i32, %arg1: i32) -> (i32, i32) {
    %c0_i32 = arith.constant 0 : i32
    %c0_i32_0 = arith.constant 0 : i32
    %c0_i32_1 = arith.constant 0 : i32
    return %c0_i32, %c0_i32_0 : i32, i32
  }
  func.func @transform_2(%arg0: i32, %arg1: i32) -> (i32, i32) {
    %c0_i32 = arith.constant 0 : i32
    %c0_i32_0 = arith.constant 0 : i32
    %c0_i32_1 = arith.constant 0 : i32
    return %c0_i32, %c0_i32_0 : i32, i32
  }
  func.func @transform_3(%arg0: i32, %arg1: i32) -> (i32, i32) {
    %c0_i32 = arith.constant 0 : i32
    %c0_i32_0 = arith.constant 0 : i32
    %c0_i32_1 = arith.constant 0 : i32
    return %c0_i32, %c0_i32_0 : i32, i32
  }
  func.func @transform_4(%arg0: i32, %arg1: i32) -> (i32, i32) {
    %c0_i32 = arith.constant 0 : i32
    %c0_i32_0 = arith.constant 0 : i32
    %c0_i32_1 = arith.constant 0 : i32
    return %c0_i32, %c0_i32_0 : i32, i32
  }
  func.func @transform_5(%arg0: i32, %arg1: i32) -> (i32, i32) {
    %c0_i32 = arith.constant 0 : i32
    %c0_i32_0 = arith.constant 0 : i32
    %c0_i32_1 = arith.constant 0 : i32
    return %c0_i32, %c0_i32_0 : i32, i32
  }
  func.func @transform_6(%arg0: i32, %arg1: i32) -> (i32, i32) {
    %c0_i32 = arith.constant 0 : i32
    %c0_i32_0 = arith.constant 0 : i32
    %c0_i32_1 = arith.constant 0 : i32
    return %c0_i32, %c0_i32_0 : i32, i32
  }
  func.func @transform_7(%arg0: i32, %arg1: i32) -> (i32, i32) {
    %0 = arith.muli %arg1, %arg0 : i32
    %c0_i32 = arith.constant 0 : i32
    %c0_i32_0 = arith.constant 0 : i32
    return %0, %c0_i32 : i32, i32
  }
}

</mosaic_0001>

<llo_original>
// kernel: tpu_custom_call.1
$region0: #{tpu_custom_call.1}
  #allocation0 [shape = 'u32[]', space=smem, size = 0x4, offset = 0x4, fixed_abs, tag = 'smem constant byte address 0x4 - core index']
  #allocation1 [shape = 'u32[144,128]{1,0:T(1,128)}', space=vmem, size = 0x12000, scoped, tag = 'internal scratch']
  #allocation2 [shape = 'f32[32,128]{1,0:T(8,128)}', space=vmem, size = 0x4000, scoped, tag = 'scratch operand']
  #allocation3 [shape = 'f32[1,128]{1,0:T(1,128)}', space=vmem, size = 0x200, scoped, tag = 'scratch operand']
  #allocation4 [shape = 'f32[1,128]{1,0:T(1,128)}', space=vmem, size = 0x200, scoped, tag = 'scratch operand']
  %s0 = inlined_call_operand.hbm [shape: bf16[32,128], index: 0, kind: input, shape index: {}]
  %s1 = inlined_call_operand.hbm [shape: bf16[128,128], index: 1, kind: input, shape index: {}]
  %s2 = inlined_call_operand.vmem [shape: f32[1,128], index: 2, kind: input, shape index: {}]
  %s3 = inlined_call_operand.vmem [shape: f32[1,128], index: 3, kind: input, shape index: {}]
  %s4 = inlined_call_operand.vmem [shape: f32[1,128], index: 4, kind: input, shape index: {}]
  %s5 = inlined_call_operand.hbm [shape: bf16[128,128], index: 5, kind: input, shape index: {}]
  %s6 = inlined_call_operand.vmem [shape: f32[1,128], index: 6, kind: input, shape index: {}]
  %s7 = inlined_call_operand.hbm [shape: f32[32,128], index: 7, kind: output, shape index: {}]
  %s8 = sld [smem:[#allocation0]]
  $region85: #{tpu_custom_call.1} parent=0
    _
  %s10 = ssub.s32 1, %s8
  %s11 = scalar_select 0, %s10, %s8
  $region1: #{tpu_custom_call.1} parent=0
    #allocation5 [shape = 'u8[8192]{0}', space=vmem, size = 0x2000, scoped, tag = 'input window, operand 0']
    #allocation6 [shape = 's32[2]{0}', space=sflag, size = 0x8, scoped, tag = 'scoped memory for tpu_custom_call.1']
    #allocation7 [shape = 's32[2]{0}', space=sflag, size = 0x8, scoped, tag = 'scoped memory for tpu_custom_call.1']
    #allocation8 [shape = 'u8[32768]{0}', space=vmem, size = 0x8000, scoped, tag = 'input window, operand 1, single buffered']
    #allocation9 [shape = 's32[1]{0}', space=sflag, size = 0x4, scoped, tag = 'scoped memory for tpu_custom_call.1']
    #allocation10 [shape = 'u8[32768]{0}', space=vmem, size = 0x8000, scoped, tag = 'input window, operand 5, single buffered']
    #allocation11 [shape = 'u8[16384]{0}', space=vmem, size = 0x4000, scoped, tag = 'output window, operand 0']
    %12 = vsyncpa [#allocation6], 0
    %s13 = scalar_lea.sflag [#allocation6], 1
    %14 = vsyncpa %s13, 0
    %15 = vsyncpa [#allocation9], 0
    %16 = vsyncpa [#allocation7], 0
    %s17 = scalar_lea.sflag [#allocation7], 1
    %18 = vsyncpa %s17, 0
    loop: start=0, step=1, limit=6
    $region2: #{tpu_custom_call.1} parent=1 // loop_pre_header
      _
    $region3: #{tpu_custom_call.1} parent=1 // loop_header
      %s20 = sphi 0, %s24
      %p21 = scmp.ge.s32.totalorder %s20, 6
      %s27 = sphi 0, %s39
      %s28 = sphi 0, %s35
      %s29 = sphi 0, %s27
      %s30 = sphi 0, %s28
      %s31 = sphi 0, %s29
      %s32 = sphi 0, %s30
      %s48 = sphi 0, %s50
      %s51 = sphi 0, %s48
      %s52 = sphi 0, %s51
      %s68 = sphi 0, %s52
      %s72 = sphi 0, %s72
      %s74 = sphi 0, %s72
      %s75 = sphi 0, %s74
      %s89 = sphi 0, %s75
      %s93 = sphi 0, %s93
      %s95 = sphi 0, %s93
      %s96 = sphi 0, %s95
      %s110 = sphi 0, %s96
      %s114 = sphi 0, %s114
      %s116 = sphi 0, %s114
      %s117 = sphi 0, %s116
      %s131 = sphi 0, %s117
      %s135 = sphi 0, %s135
      %s137 = sphi 0, %s135
      %s138 = sphi 0, %s137
      %s152 = sphi 0, %s138
      %s156 = sphi 0, %s156
      %s158 = sphi 0, %s156
      %s159 = sphi 0, %s158
      %s173 = sphi 0, %s159
      %s177 = sphi 0, %s177
      %s179 = sphi 0, %s177
      %s180 = sphi 0, %s179
      %s194 = sphi 0, %s180
      %s202 = sphi 0, %s204
      %s205 = sphi 0, %s202
      %s206 = sphi 0, %s205
      %s222 = sphi 0, %s206
    $region4: #{tpu_custom_call.1} parent=1 // loop_header_branch
      %23 = sbr.rel (%p21) target = $region8
    $region5: #{tpu_custom_call.1} parent=1 // loop_body
      %s25 = ssub.s32 %s20, 1
      %s26 = ssub.s32 %s20, 2
      %s33 = sadd.s32 1, %s28
      %p34 = scmp.ge.s32.totalorder %s33, 2
      %s35 = scalar_select %p34, 0, %s33
      %s36 = sadd.s32 1, %s27
      %s37 = scalar_select %p34, %s36, %s27
      %p38 = scmp.ge.s32.totalorder %s37, 2
      %s39 = scalar_select %p38, 0, %s37
      %s40 = ssub.s32 1, %s27
      %s41 = smul.u32 %s28, %s40
      %s42 = sadd.s32 %s41, %s27
      %s43 = ssub.s32 1, %s39
      %s44 = smul.u32 %s35, %s43
      %s45 = sadd.s32 %s44, %s39
      %s46 = ssub.s32 %s42, %s45
      %p47 = scmp.eq.s32.totalorder %s46, 0
      %s49 = sadd.s32 %s48, 1
      %s50 = scalar_select %p47, %s48, %s49
      %p53 = pneg %p47
      %p54 = scmp.eq.s32.totalorder %s20, 3
      %p55 = por %p53, %p54
      %p56 = scmp.ne.s32.totalorder %s48, %s51
      %p57 = scmp.eq.s32.totalorder %s20, 0
      %p58 = por %p56, %p57
      %p59 = scmp.ne.s32.totalorder %s48, %s51
      %p60 = scmp.eq.s32.totalorder %s25, 3
      %p61 = por %p59, %p60
      %p62 = scmp.ne.s32.totalorder %s51, %s52
      %p63 = scmp.eq.s32.totalorder %s25, 0
      %p64 = por %p62, %p63
      %p65 = scmp.ne.s32.totalorder %s51, %s52
      %p66 = scmp.eq.s32.totalorder %s26, 3
      %p67 = por %p65, %p66
      %p69 = scmp.ne.s32.totalorder %s52, %s68
      %p70 = scmp.eq.s32.totalorder %s26, 0
      %p71 = por %p69, %p70
      %s73 = sadd.s32 %s72, 1
      %p76 = scmp.eq.s32.totalorder %s20, 3
      %p77 = scmp.ne.s32.totalorder %s72, %s74
      %p78 = scmp.eq.s32.totalorder %s20, 0
      %p79 = por %p77, %p78
      %p80 = scmp.ne.s32.totalorder %s72, %s74
      %p81 = scmp.eq.s32.totalorder %s25, 3
      %p82 = por %p80, %p81
      %p83 = scmp.ne.s32.totalorder %s74, %s75
      %p84 = scmp.eq.s32.totalorder %s25, 0
      %p85 = por %p83, %p84
      %p86 = scmp.ne.s32.totalorder %s74, %s75
      %p87 = scmp.eq.s32.totalorder %s26, 3
      %p88 = por %p86, %p87
      %p90 = scmp.ne.s32.totalorder %s75, %s89
      %p91 = scmp.eq.s32.totalorder %s26, 0
      %p92 = por %p90, %p91
      %s94 = sadd.s32 %s93, 1
      %p97 = scmp.eq.s32.totalorder %s20, 3
      %p98 = scmp.ne.s32.totalorder %s93, %s95
      %p99 = scmp.eq.s32.totalorder %s20, 0
      %p100 = por %p98, %p99
      %p101 = scmp.ne.s32.totalorder %s93, %s95
      %p102 = scmp.eq.s32.totalorder %s25, 3
      %p103 = por %p101, %p102
      %p104 = scmp.ne.s32.totalorder %s95, %s96
      %p105 = scmp.eq.s32.totalorder %s25, 0
      %p106 = por %p104, %p105
      %p107 = scmp.ne.s32.totalorder %s95, %s96
      %p108 = scmp.eq.s32.totalorder %s26, 3
      %p109 = por %p107, %p108
      %p111 = scmp.ne.s32.totalorder %s96, %s110
      %p112 = scmp.eq.s32.totalorder %s26, 0
      %p113 = por %p111, %p112
      %s115 = sadd.s32 %s114, 1
      %p118 = scmp.eq.s32.totalorder %s20, 3
      %p119 = scmp.ne.s32.totalorder %s114, %s116
      %p120 = scmp.eq.s32.totalorder %s20, 0
      %p121 = por %p119, %p120
      %p122 = scmp.ne.s32.totalorder %s114, %s116
      %p123 = scmp.eq.s32.totalorder %s25, 3
      %p124 = por %p122, %p123
      %p125 = scmp.ne.s32.totalorder %s116, %s117
      %p126 = scmp.eq.s32.totalorder %s25, 0
      %p127 = por %p125, %p126
      %p128 = scmp.ne.s32.totalorder %s116, %s117
      %p129 = scmp.eq.s32.totalorder %s26, 3
      %p130 = por %p128, %p129
      %p132 = scmp.ne.s32.totalorder %s117, %s131
      %p133 = scmp.eq.s32.totalorder %s26, 0
      %p134 = por %p132, %p133
      %s136 = sadd.s32 %s135, 1
      %p139 = scmp.eq.s32.totalorder %s20, 3
      %p140 = scmp.ne.s32.totalorder %s135, %s137
      %p141 = scmp.eq.s32.totalorder %s20, 0
      %p142 = por %p140, %p141
      %p143 = scmp.ne.s32.totalorder %s135, %s137
      %p144 = scmp.eq.s32.totalorder %s25, 3
      %p145 = por %p143, %p144
      %p146 = scmp.ne.s32.totalorder %s137, %s138
      %p147 = scmp.eq.s32.totalorder %s25, 0
      %p148 = por %p146, %p147
      %p149 = scmp.ne.s32.totalorder %s137, %s138
      %p150 = scmp.eq.s32.totalorder %s26, 3
      %p151 = por %p149, %p150
      %p153 = scmp.ne.s32.totalorder %s138, %s152
      %p154 = scmp.eq.s32.totalorder %s26, 0
      %p155 = por %p153, %p154
      %s157 = sadd.s32 %s156, 1
      %p160 = scmp.eq.s32.totalorder %s20, 3
      %p161 = scmp.ne.s32.totalorder %s156, %s158
      %p162 = scmp.eq.s32.totalorder %s20, 0
      %p163 = por %p161, %p162
      %p164 = scmp.ne.s32.totalorder %s156, %s158
      %p165 = scmp.eq.s32.totalorder %s25, 3
      %p166 = por %p164, %p165
      %p167 = scmp.ne.s32.totalorder %s158, %s159
      %p168 = scmp.eq.s32.totalorder %s25, 0
      %p169 = por %p167, %p168
      %p170 = scmp.ne.s32.totalorder %s158, %s159
      %p171 = scmp.eq.s32.totalorder %s26, 3
      %p172 = por %p170, %p171
      %p174 = scmp.ne.s32.totalorder %s159, %s173
      %p175 = scmp.eq.s32.totalorder %s26, 0
      %p176 = por %p174, %p175
      %s178 = sadd.s32 %s177, 1
      %p181 = scmp.eq.s32.totalorder %s20, 3
      %p182 = scmp.ne.s32.totalorder %s177, %s179
      %p183 = scmp.eq.s32.totalorder %s20, 0
      %p184 = por %p182, %p183
      %p185 = scmp.ne.s32.totalorder %s177, %s179
      %p186 = scmp.eq.s32.totalorder %s25, 3
      %p187 = por %p185, %p186
      %p188 = scmp.ne.s32.totalorder %s179, %s180
      %p189 = scmp.eq.s32.totalorder %s25, 0
      %p190 = por %p188, %p189
      %p191 = scmp.ne.s32.totalorder %s179, %s180
      %p192 = scmp.eq.s32.totalorder %s26, 3
      %p193 = por %p191, %p192
      %p195 = scmp.ne.s32.totalorder %s180, %s194
      %p196 = scmp.eq.s32.totalorder %s26, 0
      %p197 = por %p195, %p196
      %s198 = smul.u32 %s28, %s27
      %s199 = smul.u32 %s35, %s39
      %s200 = ssub.s32 %s198, %s199
      %p201 = scmp.eq.s32.totalorder %s200, 0
      %s203 = sadd.s32 %s202, 1
      %s204 = scalar_select %p201, %s202, %s203
      %p207 = pneg %p201
      %p208 = scmp.eq.s32.totalorder %s20, 3
      %p209 = por %p207, %p208
      %p210 = scmp.ne.s32.totalorder %s202, %s205
      %p211 = scmp.eq.s32.totalorder %s20, 0
      %p212 = por %p210, %p211
      %p213 = scmp.ne.s32.totalorder %s202, %s205
      %p214 = scmp.eq.s32.totalorder %s25, 3
      %p215 = por %p213, %p214
      %p216 = scmp.ne.s32.totalorder %s205, %s206
      %p217 = scmp.eq.s32.totalorder %s25, 0
      %p218 = por %p216, %p217
      %p219 = scmp.ne.s32.totalorder %s205, %s206
      %p220 = scmp.eq.s32.totalorder %s26, 3
      %p221 = por %p219, %p220
      %p223 = scmp.ne.s32.totalorder %s206, %s222
      %p224 = scmp.eq.s32.totalorder %s26, 0
      %p225 = por %p223, %p224
      %p226 = scmp.le.s32.totalorder 1, %s20
      %p227 = scmp.lt.s32.totalorder %s20, 5
      %p228 = pnand %p226, %p227
      %p229 = pneg %p228
      // Predicated region
      $region9: #{tpu_custom_call.1} parent=5 // pred_check
        _
      $region10: #{tpu_custom_call.1} parent=5 // pred_check_branch
        %231 = sbr.rel (%p228) target = $region12
      $region11: #{tpu_custom_call.1} parent=5 // pred_region
        %s232 = ssub.s32 %s20, 1
        // Predicated region
        $region13: #{tpu_custom_call.1} parent=11 // pred_check
          %p233 = pneg %p85
        $region14: #{tpu_custom_call.1} parent=11 // pred_check_branch
          %235 = sbr.rel (%p233) target = $region16
        $region15: #{tpu_custom_call.1} parent=11 // pred_region
          %s237 = ssub.s32 1024, 1024
          %238 = vsyncadd [#allocation9], %s237
          %s239 = sshll.u32 [#allocation8], 4
          %s240 = int_to_ptr.vmem [resolvable:$true] %s239
          %245 = dma.hbm_to_vmem [thread:$0]  %s1, 1024, %s240, [#allocation9], 64, 64, 4
        $region16: #{tpu_custom_call.1} parent=11 // pred_fallthru
          _
        // Predicated region
        $region17: #{tpu_custom_call.1} parent=11 // pred_check
          %p246 = pneg %p106
        $region18: #{tpu_custom_call.1} parent=11 // pred_check_branch
          %248 = sbr.rel (%p246) target = $region20
        $region19: #{tpu_custom_call.1} parent=11 // pred_region
          _
        $region20: #{tpu_custom_call.1} parent=11 // pred_fallthru
          _
        // Predicated region
        $region21: #{tpu_custom_call.1} parent=11 // pred_check
          %p249 = pneg %p127
        $region22: #{tpu_custom_call.1} parent=11 // pred_check_branch
          %251 = sbr.rel (%p249) target = $region24
        $region23: #{tpu_custom_call.1} parent=11 // pred_region
          _
        $region24: #{tpu_custom_call.1} parent=11 // pred_fallthru
          _
        // Predicated region
        $region25: #{tpu_custom_call.1} parent=11 // pred_check
          %p252 = pneg %p148
        $region26: #{tpu_custom_call.1} parent=11 // pred_check_branch
          %254 = sbr.rel (%p252) target = $region28
        $region27: #{tpu_custom_call.1} parent=11 // pred_region
          _
        $region28: #{tpu_custom_call.1} parent=11 // pred_fallthru
          _
        // Predicated region
        $region29: #{tpu_custom_call.1} parent=11 // pred_check
          %p255 = pneg %p169
        $region30: #{tpu_custom_call.1} parent=11 // pred_check_branch
          %257 = sbr.rel (%p255) target = $region32
        $region31: #{tpu_custom_call.1} parent=11 // pred_region
          %s259 = ssub.s32 1024, 1024
          %260 = vsyncadd [#allocation9], %s259
          %s261 = sshll.u32 [#allocation10], 4
          %s262 = int_to_ptr.vmem [resolvable:$true] %s261
          %267 = dma.hbm_to_vmem [thread:$0]  %s5, 1024, %s262, [#allocation9], 64, 64, 4
        $region32: #{tpu_custom_call.1} parent=11 // pred_fallthru
          _
        // Predicated region
        $region33: #{tpu_custom_call.1} parent=11 // pred_check
          %p268 = pneg %p190
        $region34: #{tpu_custom_call.1} parent=11 // pred_check_branch
          %270 = sbr.rel (%p268) target = $region36
        $region35: #{tpu_custom_call.1} parent=11 // pred_region
          _
        $region36: #{tpu_custom_call.1} parent=11 // pred_fallthru
          _
      $region12: #{tpu_custom_call.1} parent=5 // pred_fallthru
        _
      %p271 = scmp.lt.s32.totalorder %s20, 4
      // Predicated region
      $region37: #{tpu_custom_call.1} parent=5 // pred_check
        %p272 = pneg %p271
      $region38: #{tpu_custom_call.1} parent=5 // pred_check_branch
        %274 = sbr.rel (%p272) target = $region40
      $region39: #{tpu_custom_call.1} parent=5 // pred_region
        // Predicated region
        $region41: #{tpu_custom_call.1} parent=39 // pred_check
          %p275 = pneg %p58
        $region42: #{tpu_custom_call.1} parent=39 // pred_check_branch
          %277 = sbr.rel (%p275) target = $region44
        $region43: #{tpu_custom_call.1} parent=39 // pred_region
          %s278 = sand.u32 %s48, 1
          %s279 = scalar_lea.sflag [#allocation6], %s278
          %s280 = sand.u32 %s48, 1
          %s281 = smul.addr %s280, 8
          %s282 = scalar_lea.vmem [#allocation5], %s281
          %s283 = ssub.s32 1, %s27
          %s284 = smul.u32 %s28, %s283
          %s285 = sadd.s32 %s284, %s27
          %s286 = smul.u32 2, %s285
          %s288 = ssub.s32 128, 128
          %289 = vsyncadd %s279, %s288
          %s290 = smul.addr %s286, 64
          %s291 = scalar_lea.hbm %s0, %s290
          %s292 = sshll.u32 %s282, 4
          %s293 = int_to_ptr.vmem [resolvable:$true] %s292
          %298 = dma.hbm_to_vmem [thread:$0]  %s291, 128, %s293, %s279, 64, 64, 4
        $region44: #{tpu_custom_call.1} parent=39 // pred_fallthru
          _
      $region40: #{tpu_custom_call.1} parent=5 // pred_fallthru
        _
      %p299 = scmp.le.s32.totalorder 1, %s20
      %p300 = scmp.lt.s32.totalorder %s20, 5
      %p301 = pnand %p299, %p300
      %p302 = pneg %p301
      // Predicated region
      $region45: #{tpu_custom_call.1} parent=5 // pred_check
        _
      $region46: #{tpu_custom_call.1} parent=5 // pred_check_branch
        %304 = sbr.rel (%p301) target = $region48
      $region47: #{tpu_custom_call.1} parent=5 // pred_region
        %s305 = ssub.s32 %s20, 1
        %s306 = sand.u32 %s51, 1
        %s307 = scalar_lea.sflag [#allocation6], %s306
        %s308 = sand.u32 %s51, 1
        %s309 = smul.addr %s308, 8
        %s310 = scalar_lea.vmem [#allocation5], %s309
        // Predicated region
        $region49: #{tpu_custom_call.1} parent=47 // pred_check
          %p311 = pneg %p64
        $region50: #{tpu_custom_call.1} parent=47 // pred_check_branch
          %313 = sbr.rel (%p311) target = $region52
        $region51: #{tpu_custom_call.1} parent=47 // pred_region
          %314 = dma.done %s307, 128
        $region52: #{tpu_custom_call.1} parent=47 // pred_fallthru
          _
        // Predicated region
        $region53: #{tpu_custom_call.1} parent=47 // pred_check
          %p315 = pneg %p85
        $region54: #{tpu_custom_call.1} parent=47 // pred_check_branch
          %317 = sbr.rel (%p315) target = $region56
        $region55: #{tpu_custom_call.1} parent=47 // pred_region
          %318 = dma.done [#allocation9], 1024
        $region56: #{tpu_custom_call.1} parent=47 // pred_fallthru
          _
        // Predicated region
        $region57: #{tpu_custom_call.1} parent=47 // pred_check
          %p319 = pneg %p169
        $region58: #{tpu_custom_call.1} parent=47 // pred_check_branch
          %321 = sbr.rel (%p319) target = $region60
        $region59: #{tpu_custom_call.1} parent=47 // pred_region
          %322 = dma.done [#allocation9], 1024
        $region60: #{tpu_custom_call.1} parent=47 // pred_fallthru
          _
        %s323 = sand.u32 %s51, 1
        %s324 = scalar_lea.sflag [#allocation6], %s323
        %s325 = sand.u32 %s51, 1
        %s326 = smul.addr %s325, 8
        %s327 = scalar_lea.vmem [#allocation5], %s326
        %p328 = pneg %p64
        %p329 = pneg %p61
        %p330 = pneg %p85
        %p331 = pneg %p82
        %p332 = pneg %p106
        %p333 = pneg %p103
        %p334 = pneg %p127
        %p335 = pneg %p124
        %p336 = pneg %p148
        %p337 = pneg %p145
        %p338 = pneg %p169
        %p339 = pneg %p166
        %p340 = pneg %p190
        %p341 = pneg %p187
        %p342 = pneg %p218
        %p343 = pneg %p215
        %s344 = sand.u32 %s205, 1
        %s345 = scalar_lea.sflag [#allocation7], %s344
        %s346 = sand.u32 %s205, 1
        %s347 = smul.addr %s346, 16
        %s348 = scalar_lea.vmem [#allocation11], %s347
        %s349 = ssub.s32 1, %s29
        %s350 = smul.u32 %s30, %s349
        %s351 = sadd.s32 %s350, %s29
        %s352 = smul.u32 2, %s351
        %s353 = smul.u32 %s30, %s29
        %s354 = smul.u32 2, %s353
        %s356 = smul.u32 %s30, 16
        %p357 = scmp.eq.s32.totalorder %s29, 0
        // Predicated region
        $region61: #{tpu_custom_call.1} parent=47 // pred_check
          %p358 = pneg %p357
        $region62: #{tpu_custom_call.1} parent=47 // pred_check_branch
          %360 = sbr.rel (%p358) target = $region64
        $region63: #{tpu_custom_call.1} parent=47 // pred_region
          %p361 = scmp.eq.s32.totalorder %s30, 0
          // Predicated region
          $region65: #{tpu_custom_call.1} parent=63 // pred_check
            %p362 = pneg %p361
          $region66: #{tpu_custom_call.1} parent=63 // pred_check_branch
            %364 = sbr.rel (%p362) target = $region68
          $region67: #{tpu_custom_call.1} parent=63 // pred_region
            %365 = vst [vmem:[#allocation3] sm:$0x1] 0.0
            %366 = vst [vmem:[#allocation4] sm:$0x1] 0.0
          $region68: #{tpu_custom_call.1} parent=63 // pred_fallthru
            _
          %v367 = vld [vmem:[%s310] sm:$0xf]
          %v368 = vld [vmem:[%s310 + $0x4] sm:$0xf]
          %v369 = vld [vmem:[#allocation8] sm:$0xf]
          %v370 = vld [vmem:[#allocation8 + $0x4] sm:$0xf]
          %v371 = vld [vmem:[#allocation8 + $0x8] sm:$0xf]
          %v372 = vld [vmem:[#allocation8 + $0xc] sm:$0xf]
          %v373 = vld [vmem:[#allocation8 + $0x10] sm:$0xf]
          %v374 = vld [vmem:[#allocation8 + $0x14] sm:$0xf]
          %v375 = vld [vmem:[#allocation8 + $0x18] sm:$0xf]
          %v376 = vld [vmem:[#allocation8 + $0x1c] sm:$0xf]
          %v377 = vld [vmem:[#allocation8 + $0x20] sm:$0xf]
          %v378 = vld [vmem:[#allocation8 + $0x24] sm:$0xf]
          %v379 = vld [vmem:[#allocation8 + $0x28] sm:$0xf]
          %v380 = vld [vmem:[#allocation8 + $0x2c] sm:$0xf]
          %v381 = vld [vmem:[#allocation8 + $0x30] sm:$0xf]
          %v382 = vld [vmem:[#allocation8 + $0x34] sm:$0xf]
          %v383 = vld [vmem:[#allocation8 + $0x38] sm:$0xf]
          %v384 = vld [vmem:[#allocation8 + $0x3c] sm:$0xf]
          %v385 = vld [vmem:[%s2] sm:$0x1]
          %v387 = vlaneseq
          %v388 = vshrl.u32 %v387, 7
          %v389 = vsub.s32 0, %v388
          %v390 = vrot.slane %v385, %v389
          %v394 = vunpack.c.l.b16 %v367
          %v395 = vunpack.c.l.b16 %v368
          %v396 = vpack.c.b16 %v395, %v394
          %v414 = vunpack.c.l.b16 %v369
          %v415 = vunpack.c.l.b16 %v370
          %v416 = vunpack.c.l.b16 %v371
          %v417 = vunpack.c.l.b16 %v372
          %v418 = vunpack.c.l.b16 %v373
          %v419 = vunpack.c.l.b16 %v374
          %v420 = vunpack.c.l.b16 %v375
          %v421 = vunpack.c.l.b16 %v376
          %v422 = vunpack.c.l.b16 %v377
          %v423 = vunpack.c.l.b16 %v378
          %v424 = vunpack.c.l.b16 %v379
          %v425 = vunpack.c.l.b16 %v380
          %v426 = vunpack.c.l.b16 %v381
          %v427 = vunpack.c.l.b16 %v382
          %v428 = vunpack.c.l.b16 %v383
          %v429 = vunpack.c.l.b16 %v384
          %v430 = vpack.c.b16 %v415, %v414
          %v431 = vpack.c.b16 %v417, %v416
          %v432 = vpack.c.b16 %v419, %v418
          %v433 = vpack.c.b16 %v421, %v420
          %v434 = vpack.c.b16 %v423, %v422
          %v435 = vpack.c.b16 %v425, %v424
          %v436 = vpack.c.b16 %v427, %v426
          %v437 = vpack.c.b16 %v429, %v428
          %446 = vmatprep.subr.bf16.mxu0 0
          %447 = vmatpush1.bf16.msra.mxu0 %v437
          %448 = vmatprep.subr.bf16.mxu0 0
          %449 = vmatpush1.bf16.msra.mxu0 %v436
          %450 = vmatprep.subr.bf16.mxu0 0
          %451 = vmatpush1.bf16.msra.mxu0 %v435
          %452 = vmatprep.subr.bf16.mxu0 0
          %453 = vmatpush1.bf16.msra.mxu0 %v434
          %454 = vmatprep.subr.bf16.mxu0 0
          %455 = vmatpush1.bf16.msra.mxu0 %v433
          %456 = vmatprep.subr.bf16.mxu0 0
          %457 = vmatpush1.bf16.msra.mxu0 %v432
          %458 = vmatprep.subr.bf16.mxu0 0
          %459 = vmatpush1.bf16.msra.mxu0 %v431
          %460 = vmatprep.subr.bf16.mxu0 0
          %461 = vmatpush1.bf16.msra.mxu0 %v430
          %462 = vmatprep.subr.bf16.mxu0 0
          %463 = vmatpush2.bf16.msra.mxu0 0
          %464 = vmatprep.subr.bf16.mxu0 0
          %465 = vmatpush2.bf16.msra.mxu0 0
          %466 = vmatprep.subr.bf16.mxu0 0
          %467 = vmatpush2.bf16.msra.mxu0 0
          %468 = vmatprep.subr.bf16.mxu0 0
          %469 = vmatpush2.bf16.msra.mxu0 0
          %470 = vmatprep.subr.bf16.mxu0 0
          %471 = vmatpush2.bf16.msra.mxu0 0
          %472 = vmatprep.subr.bf16.mxu0 0
          %473 = vmatpush2.bf16.msra.mxu0 0
          %474 = vmatprep.subr.bf16.mxu0 0
          %475 = vmatpush2.bf16.msra.mxu0 0
          %476 = vmatprep.subr.bf16.mxu0 0
          %477 = vmatpush2.bf16.msra.mxu0 0
          %478 = vmatprep.mubr.bf16.mxu0 0
          %479 = vmatmul.mubr.bf16.gmra.mxu0 %v396
          %v480 = vpop.f32.mrf.mxu0
          %v481 = vadd.f32 %v390, %v480
          %v482 = vpop.f32.mrf.mxu0
          %v483 = vpop.f32.mrf.mxu0
          %v484 = vadd.f32 %v390, %v483
          %v485 = vpop.f32.mrf.mxu0
          %486 = vdwg.mxu0
          %s487 = scalar_lea.vmem [#allocation2], %s356
          %488 = vst [vmem:[%s487] sm:$0xff] %v481
          %489 = vst [vmem:[%s487 + $0x8] sm:$0xff] %v484
          %v490 = vld [vmem:[#allocation3] sm:$0x1]
          %v491 = vadd.f32 %v481, %v484
          %v492 = vrot.slane %v491, 4
          %v493 = vadd.f32 %v491, %v492
          %v494 = vrot.slane %v493, 2
          %v495 = vadd.f32 %v493, %v494
          %v496 = vrot.slane %v495, 1
          %v497 = vadd.f32 %v495, %v496
          %v498 = vadd.f32 %v490, %v497
          %499 = vst [vmem:[#allocation3] sm:$0x1] %v498
          %v500 = vld [vmem:[#allocation4] sm:$0x1]
          %v501 = vmul.f32 %v481, %v481
          %v502 = vmul.f32 %v484, %v484
          %v503 = vadd.f32 %v501, %v502
          %v504 = vrot.slane %v503, 4
          %v505 = vadd.f32 %v503, %v504
          %v506 = vrot.slane %v505, 2
          %v507 = vadd.f32 %v505, %v506
          %v508 = vrot.slane %v507, 1
          %v509 = vadd.f32 %v507, %v508
          %v510 = vadd.f32 %v500, %v509
          %511 = vst [vmem:[#allocation4] sm:$0x1] %v510
        $region64: #{tpu_custom_call.1} parent=47 // pred_fallthru
          _
        %p512 = scmp.eq.s32.totalorder %s29, 1
        // Predicated region
        $region69: #{tpu_custom_call.1} parent=47 // pred_check
          %p513 = pneg %p512
        $region70: #{tpu_custom_call.1} parent=47 // pred_check_branch
          %515 = sbr.rel (%p513) target = $region72
        $region71: #{tpu_custom_call.1} parent=47 // pred_region
          %v516 = vld [vmem:[#allocation3] sm:$0x1]
          %v517 = vmul.f32 %v516, 0.03125
          %v518 = vld [vmem:[#allocation4] sm:$0x1]
          %v519 = vmul.f32 %v518, 0.03125
          %v520 = vmul.f32 %v517, %v517
          %v521 = vsub.f32 %v519, %v520
          %v522 = vadd.f32 %v521, 1e-05
          %v523 = vrsqrt.pop %v522
          %v524 = vld [vmem:[%s3] sm:$0x1]
          %v525 = vmul.f32 %v524, %v523
          %v526 = vld [vmem:[%s4] sm:$0x1]
          %v527 = vmul.f32 %v517, %v525
          %v528 = vsub.f32 %v526, %v527
          %s529 = scalar_lea.vmem [#allocation2], %s356
          %v530 = vld [vmem:[%s529] sm:$0xff]
          %v531 = vld [vmem:[%s529 + $0x8] sm:$0xff]
          %v533 = vlaneseq
          %v534 = vshrl.u32 %v533, 7
          %v535 = vsub.s32 0, %v534
          %v536 = vrot.slane %v525, %v535
          %v538 = vmul.f32 %v530, %v536
          %v539 = vmul.f32 %v531, %v536
          %v541 = vlaneseq
          %v542 = vshrl.u32 %v541, 7
          %v543 = vsub.s32 0, %v542
          %v544 = vrot.slane %v528, %v543
          %v546 = vadd.f32 %v538, %v544
          %v547 = vadd.f32 %v539, %v544
          %v548 = vmax.f32 %v546, 0.0
          %v549 = vmax.f32 %v547, 0.0
          %v550 = vpack.c.bf16 %v549, %v548
          %v551 = vld [vmem:[#allocation10] sm:$0xf]
          %v552 = vld [vmem:[#allocation10 + $0x4] sm:$0xf]
          %v553 = vld [vmem:[#allocation10 + $0x8] sm:$0xf]
          %v554 = vld [vmem:[#allocation10 + $0xc] sm:$0xf]
          %v555 = vld [vmem:[#allocation10 + $0x10] sm:$0xf]
          %v556 = vld [vmem:[#allocation10 + $0x14] sm:$0xf]
          %v557 = vld [vmem:[#allocation10 + $0x18] sm:$0xf]
          %v558 = vld [vmem:[#allocation10 + $0x1c] sm:$0xf]
          %v559 = vld [vmem:[#allocation10 + $0x20] sm:$0xf]
          %v560 = vld [vmem:[#allocation10 + $0x24] sm:$0xf]
          %v561 = vld [vmem:[#allocation10 + $0x28] sm:$0xf]
          %v562 = vld [vmem:[#allocation10 + $0x2c] sm:$0xf]
          %v563 = vld [vmem:[#allocation10 + $0x30] sm:$0xf]
          %v564 = vld [vmem:[#allocation10 + $0x34] sm:$0xf]
          %v565 = vld [vmem:[#allocation10 + $0x38] sm:$0xf]
          %v566 = vld [vmem:[#allocation10 + $0x3c] sm:$0xf]
          %v567 = vld [vmem:[%s6] sm:$0x1]
          %v569 = vlaneseq
          %v570 = vshrl.u32 %v569, 7
          %v571 = vsub.s32 0, %v570
          %v572 = vrot.slane %v567, %v571
          %v590 = vunpack.c.l.b16 %v551
          %v591 = vunpack.c.l.b16 %v552
          %v592 = vunpack.c.l.b16 %v553
          %v593 = vunpack.c.l.b16 %v554
          %v594 = vunpack.c.l.b16 %v555
          %v595 = vunpack.c.l.b16 %v556
          %v596 = vunpack.c.l.b16 %v557
          %v597 = vunpack.c.l.b16 %v558
          %v598 = vunpack.c.l.b16 %v559
          %v599 = vunpack.c.l.b16 %v560
          %v600 = vunpack.c.l.b16 %v561
          %v601 = vunpack.c.l.b16 %v562
          %v602 = vunpack.c.l.b16 %v563
          %v603 = vunpack.c.l.b16 %v564
          %v604 = vunpack.c.l.b16 %v565
          %v605 = vunpack.c.l.b16 %v566
          %v606 = vpack.c.b16 %v591, %v590
          %v607 = vpack.c.b16 %v593, %v592
          %v608 = vpack.c.b16 %v595, %v594
          %v609 = vpack.c.b16 %v597, %v596
          %v610 = vpack.c.b16 %v599, %v598
          %v611 = vpack.c.b16 %v601, %v600
          %v612 = vpack.c.b16 %v603, %v602
          %v613 = vpack.c.b16 %v605, %v604
          %622 = vmatprep.subr.bf16.mxu0 0
          %623 = vmatpush1.bf16.msra.mxu0 %v613
          %624 = vmatprep.subr.bf16.mxu0 0
          %625 = vmatpush1.bf16.msra.mxu0 %v612
          %626 = vmatprep.subr.bf16.mxu0 0
          %627 = vmatpush1.bf16.msra.mxu0 %v611
          %628 = vmatprep.subr.bf16.mxu0 0
          %629 = vmatpush1.bf16.msra.mxu0 %v610
          %630 = vmatprep.subr.bf16.mxu0 0
          %631 = vmatpush1.bf16.msra.mxu0 %v609
          %632 = vmatprep.subr.bf16.mxu0 0
          %633 = vmatpush1.bf16.msra.mxu0 %v608
          %634 = vmatprep.subr.bf16.mxu0 0
          %635 = vmatpush1.bf16.msra.mxu0 %v607
          %636 = vmatprep.subr.bf16.mxu0 0
          %637 = vmatpush1.bf16.msra.mxu0 %v606
          %638 = vmatprep.subr.bf16.mxu0 0
          %639 = vmatpush2.bf16.msra.mxu0 0
          %640 = vmatprep.subr.bf16.mxu0 0
          %641 = vmatpush2.bf16.msra.mxu0 0
          %642 = vmatprep.subr.bf16.mxu0 0
          %643 = vmatpush2.bf16.msra.mxu0 0
          %644 = vmatprep.subr.bf16.mxu0 0
          %645 = vmatpush2.bf16.msra.mxu0 0
          %646 = vmatprep.subr.bf16.mxu0 0
          %647 = vmatpush2.bf16.msra.mxu0 0
          %648 = vmatprep.subr.bf16.mxu0 0
          %649 = vmatpush2.bf16.msra.mxu0 0
          %650 = vmatprep.subr.bf16.mxu0 0
          %651 = vmatpush2.bf16.msra.mxu0 0
          %652 = vmatprep.subr.bf16.mxu0 0
          %653 = vmatpush2.bf16.msra.mxu0 0
          %654 = vmatprep.mubr.bf16.mxu0 0
          %655 = vmatmul.mubr.bf16.gmra.mxu0 %v550
          %v656 = vpop.f32.mrf.mxu0
          %v657 = vadd.f32 %v572, %v656
          %v658 = vpop.f32.mrf.mxu0
          %v659 = vpop.f32.mrf.mxu0
          %v660 = vadd.f32 %v572, %v659
          %v661 = vpop.f32.mrf.mxu0
          %662 = vdwg.mxu0
          %663 = vst [vmem:[%s348] sm:$0xff] %v657
          %664 = vst [vmem:[%s348 + $0x8] sm:$0xff] %v660
        $region72: #{tpu_custom_call.1} parent=47 // pred_fallthru
          _
        %s665 = sand.u32 %s205, 1
        %s666 = scalar_lea.sflag [#allocation7], %s665
        %s667 = sand.u32 %s205, 1
        %s668 = smul.addr %s667, 16
        %s669 = scalar_lea.vmem [#allocation11], %s668
        // Predicated region
        $region73: #{tpu_custom_call.1} parent=47 // pred_check
          %p670 = pneg %p215
        $region74: #{tpu_custom_call.1} parent=47 // pred_check_branch
          %672 = sbr.rel (%p670) target = $region76
        $region75: #{tpu_custom_call.1} parent=47 // pred_region
          %s673 = smul.u32 %s30, %s29
          %s674 = smul.u32 2, %s673
          %s676 = ssub.s32 256, 256
          %677 = vsyncadd %s666, %s676
          %s678 = smul.addr %s674, 128
          %s679 = scalar_lea.hbm %s7, %s678
          %s680 = sshll.u32 %s669, 4
          %s681 = int_to_ptr.vmem [resolvable:$true] %s680
          %686 = dma.vmem_to_hbm [thread:$0]  %s681, 256, %s679, %s666, 128, 128, 8
        $region76: #{tpu_custom_call.1} parent=47 // pred_fallthru
          _
      $region48: #{tpu_custom_call.1} parent=5 // pred_fallthru
        _
      %p687 = scmp.le.s32.totalorder 2, %s20
      // Predicated region
      $region77: #{tpu_custom_call.1} parent=5 // pred_check
        %p688 = pneg %p687
      $region78: #{tpu_custom_call.1} parent=5 // pred_check_branch
        %690 = sbr.rel (%p688) target = $region80
      $region79: #{tpu_custom_call.1} parent=5 // pred_region
        %s691 = ssub.s32 %s20, 2
        // Predicated region
        $region81: #{tpu_custom_call.1} parent=79 // pred_check
          %p692 = pneg %p221
        $region82: #{tpu_custom_call.1} parent=79 // pred_check_branch
          %694 = sbr.rel (%p692) target = $region84
        $region83: #{tpu_custom_call.1} parent=79 // pred_region
          %s695 = sand.u32 %s206, 1
          %s696 = scalar_lea.sflag [#allocation7], %s695
          %s697 = sand.u32 %s206, 1
          %s698 = smul.addr %s697, 16
          %s699 = scalar_lea.vmem [#allocation11], %s698
          %700 = dma.done %s696, 256
        $region84: #{tpu_custom_call.1} parent=79 // pred_fallthru
          _
      $region80: #{tpu_custom_call.1} parent=5 // pred_fallthru
        _
    $region6: #{tpu_custom_call.1} parent=1 // loop_footer
      %s24 = sadd.s32 1, %s20
    $region7: #{tpu_custom_call.1} parent=1 // loop_footer_branch
      %19 = sbr.rel target = $region3
    $region8: #{tpu_custom_call.1} parent=1 // loop_exit
      _
    %701 = vsyncpa [#allocation6], 1
    %s702 = scalar_lea.sflag [#allocation6], 1
    %703 = vsyncpa %s702, 1
    %704 = vsyncpa [#allocation9], 1
    %705 = vsyncpa [#allocation7], 1
    %s706 = scalar_lea.sflag [#allocation7], 1
    %707 = vsyncpa %s706, 1

</llo_original>
